<compile_context>
chip_gen: v5e
topology: v5e:2x2
jax: 0.10.0
libtpu: 0.0.40
codegen_flags: <defaults>
</compile_context>

<pallas_src>
import jax
import jax.numpy as jnp
from jax.experimental import pallas as pl
from jax.experimental.pallas import tpu as pltpu

LEAKY_SLOPE = 0.01   # nn.LeakyReLU default negative_slope
HIDDEN = 128
OUT_PAD = 128        # lane-dense output width (>= dim_action)


def _round_up(x, m):
    return ((x + m - 1) // m) * m


def _policy_kernel(ma_ref, x_ref, w1_ref, b1_ref, w2_ref, b2_ref, w3_ref, b3_ref,
                   out_ref):
    max_action = ma_ref[0]

    # Layer 1: Linear(dim_state -> H) + LeakyReLU   (bf16 MXU inputs, f32 accumulate)
    h = jnp.dot(x_ref[...], w1_ref[...], preferred_element_type=jnp.float32) + b1_ref[...]
    h = jnp.where(h > 0, h, LEAKY_SLOPE * h)

    # Layer 2: Linear(H -> H) + LeakyReLU
    h = jnp.dot(h.astype(jnp.bfloat16), w2_ref[...],
                preferred_element_type=jnp.float32) + b2_ref[...]
    h = jnp.where(h > 0, h, LEAKY_SLOPE * h)

    # Layer 3: Linear(H -> OUT_PAD, zero-padded cols) + Tanh, scaled by max_action.
    a = jnp.dot(h.astype(jnp.bfloat16), w3_ref[...],
                preferred_element_type=jnp.float32) + b3_ref[...]
    out_ref[...] = (jnp.tanh(a) * max_action).astype(out_ref.dtype)


def policy_forward(x, params, max_action):
    """x: (B, dim_state) float32.  params: dict of (in,out) weights and (1,out) biases."""
    B, dim_state = x.shape
    H = params["w1"].shape[1]
    dim_action = params["w3"].shape[1]

    # bf16 MXU inputs (single-pass matmul, half the DMA bytes); accumulation stays f32.
    x_bf = x.astype(jnp.bfloat16)
    w1 = params["w1"].astype(jnp.bfloat16)
    w2 = params["w2"].astype(jnp.bfloat16)

    # Lane-dense final layer: pad output columns to 128 with zeros.
    w3p = jnp.zeros((H, OUT_PAD), jnp.bfloat16).at[:, :dim_action].set(
        params["w3"].astype(jnp.bfloat16))
    b3p = jnp.zeros((1, OUT_PAD), jnp.float32).at[:, :dim_action].set(params["b3"])

    # Batch tile: multiple of 16 (bf16 sublane packing), capped at 256 rows.
    TB = min(256, _round_up(B, 16))
    B_pad = _round_up(B, TB)
    if B_pad != B:
        x_bf = jnp.pad(x_bf, ((0, B_pad - B), (0, 0)))

    ma = jnp.asarray([max_action], dtype=jnp.float32)

    out = pl.pallas_call(
        _policy_kernel,
        out_shape=jax.ShapeDtypeStruct((B_pad, OUT_PAD), jnp.float32),
        grid=(pl.cdiv(B_pad, TB),),
        in_specs=[
            pl.BlockSpec(memory_space=pltpu.MemorySpace.SMEM),     # max_action (1,)
            pl.BlockSpec((TB, dim_state), lambda i: (i, 0)),       # x tile
            pl.BlockSpec((dim_state, H), lambda i: (0, 0)),        # w1 (resident)
            pl.BlockSpec((1, H), lambda i: (0, 0)),                # b1 (resident)
            pl.BlockSpec((H, H), lambda i: (0, 0)),                # w2 (resident)
            pl.BlockSpec((1, H), lambda i: (0, 0)),                # b2 (resident)
            pl.BlockSpec((H, OUT_PAD), lambda i: (0, 0)),          # w3 padded (resident)
            pl.BlockSpec((1, OUT_PAD), lambda i: (0, 0)),          # b3 padded (resident)
        ],
        out_specs=pl.BlockSpec((TB, OUT_PAD), lambda i: (i, 0)),
        compiler_params=pltpu.CompilerParams(
            dimension_semantics=("parallel",)),
    )(ma, x_bf, w1, params["b1"], w2, params["b2"], w3p, b3p)

    return out[:B, :dim_action]


def init_policy_params(key, dim_state, dim_action, dim_hidden=HIDDEN):
    """Xavier-normal weights, zero biases (matches init_weight in the reference)."""
    def xavier_normal(k, fan_in, fan_out):
        std = (2.0 / (fan_in + fan_out)) ** 0.5
        return std * jax.random.normal(k, (fan_in, fan_out), dtype=jnp.float32)

    k1, k2, k3 = jax.random.split(key, 3)
    return {
        "w1": xavier_normal(k1, dim_state, dim_hidden),
        "b1": jnp.zeros((1, dim_hidden), jnp.float32),
        "w2": xavier_normal(k2, dim_hidden, dim_hidden),
        "b2": jnp.zeros((1, dim_hidden), jnp.float32),
        "w3": xavier_normal(k3, dim_hidden, dim_action),
        "b3": jnp.zeros((1, dim_action), jnp.float32),
    }


def _reference_forward(x, params, max_action):
    """Pure-JAX reference mirroring the kernel's bf16-input / f32-accumulate math."""
    h = jnp.dot(x.astype(jnp.bfloat16), params["w1"].astype(jnp.bfloat16),
                preferred_element_type=jnp.float32) + params["b1"]
    h = jnp.where(h > 0, h, LEAKY_SLOPE * h)
    h = jnp.dot(h.astype(jnp.bfloat16), params["w2"].astype(jnp.bfloat16),
                preferred_element_type=jnp.float32) + params["b2"]
    h = jnp.where(h > 0, h, LEAKY_SLOPE * h)
    a = jnp.dot(h.astype(jnp.bfloat16), params["w3"].astype(jnp.bfloat16),
                preferred_element_type=jnp.float32) + params["b3"]
    return jnp.tanh(a) * max_action


if __name__ == "__main__":
    dim_state, dim_action, dim_hidden = 16, 4, HIDDEN
    batch = 8
    max_action = 2.0

    key = jax.random.PRNGKey(0)
    kx, kp = jax.random.split(key)
    x = jax.random.normal(kx, (batch, dim_state), dtype=jnp.float32)
    params = init_policy_params(kp, dim_state, dim_action, dim_hidden)

    out = policy_forward(x, params, max_action)
    out = jax.block_until_ready(out)

    ref = _reference_forward(x, params, max_action)
    assert out.shape == (batch, dim_action)
    assert jnp.allclose(out, ref, atol=1e-4, rtol=1e-4), float(jnp.max(jnp.abs(out - ref)))

    print("KERNEL_OK")
</pallas_src>

<mosaic_0001>
module attributes {stable_mosaic.version = 11 : i64} {
  func.func @_policy_kernel(%arg0: i32, %arg1: memref<1xf32, #tpu.memory_space<smem>>, %arg2: memref<16x16xbf16, #tpu.memory_space<vmem>>, %arg3: memref<16x128xbf16, #tpu.memory_space<vmem>>, %arg4: memref<1x128xf32, #tpu.memory_space<vmem>>, %arg5: memref<128x128xbf16, #tpu.memory_space<vmem>>, %arg6: memref<1x128xf32, #tpu.memory_space<vmem>>, %arg7: memref<128x128xbf16, #tpu.memory_space<vmem>>, %arg8: memref<1x128xf32, #tpu.memory_space<vmem>>, %arg9: memref<16x128xf32, #tpu.memory_space<vmem>>) attributes {dimension_semantics = [#tpu.dimension_semantics<parallel>], iteration_bounds = array<i64: 1>, scalar_prefetch = 0 : i64, scratch_operands = 0 : i64, tpu.core_type = #tpu.core_type<tc>, window_params = [{transform_indices = @transform_0, window_bounds = array<i64: 1>}, {transform_indices = @transform_1, window_bounds = array<i64: 16, 16>}, {pipeline_mode = #tpu.pipeline_mode<synchronous>, transform_indices = @transform_2, window_bounds = array<i64: 16, 128>}, {pipeline_mode = #tpu.pipeline_mode<synchronous>, transform_indices = @transform_3, window_bounds = array<i64: 1, 128>}, {pipeline_mode = #tpu.pipeline_mode<synchronous>, transform_indices = @transform_4, window_bounds = array<i64: 128, 128>}, {pipeline_mode = #tpu.pipeline_mode<synchronous>, transform_indices = @transform_5, window_bounds = array<i64: 1, 128>}, {pipeline_mode = #tpu.pipeline_mode<synchronous>, transform_indices = @transform_6, window_bounds = array<i64: 128, 128>}, {pipeline_mode = #tpu.pipeline_mode<synchronous>, transform_indices = @transform_7, window_bounds = array<i64: 1, 128>}, {transform_indices = @transform_8, window_bounds = array<i64: 16, 128>}]} {
    %c0 = arith.constant 0 : index
    %0 = memref.load %arg1[%c0] : memref<1xf32, #tpu.memory_space<smem>>
    %c0_0 = arith.constant 0 : index
    %c0_1 = arith.constant 0 : index
    %1 = vector.load %arg2[%c0_0, %c0_1] : memref<16x16xbf16, #tpu.memory_space<vmem>>, vector<16x16xbf16>
    %c0_2 = arith.constant 0 : index
    %c0_3 = arith.constant 0 : index
    %2 = vector.load %arg3[%c0_2, %c0_3] : memref<16x128xbf16, #tpu.memory_space<vmem>>, vector<16x128xbf16>
    %cst = arith.constant dense<0.000000e+00> : vector<16x128xf32>
    %3 = tpu.matmul %1, %2, %cst {dimension_numbers = #tpu.dot_dimension_numbers<[1], [0], [0], [1], [0, 0, 1, 1], [], []>} : vector<16x16xbf16>, vector<16x128xbf16>, vector<16x128xf32> -> vector<16x128xf32>
    %c0_4 = arith.constant 0 : index
    %c0_5 = arith.constant 0 : index
    %4 = vector.load %arg4[%c0_4, %c0_5] : memref<1x128xf32, #tpu.memory_space<vmem>>, vector<1x128xf32>
    %5 = vector.broadcast %4 : vector<1x128xf32> to vector<16x128xf32>
    %6 = arith.addf %3, %5 : vector<16x128xf32>
    %cst_6 = arith.constant 0.000000e+00 : f32
    %7 = vector.broadcast %cst_6 : f32 to vector<16x128xf32>
    %8 = arith.cmpf ogt, %6, %7 : vector<16x128xf32>
    %cst_7 = arith.constant 0.00999999977 : f32
    %9 = vector.broadcast %cst_7 : f32 to vector<16x128xf32>
    %10 = arith.mulf %9, %6 : vector<16x128xf32>
    %11 = arith.select %8, %6, %10 : vector<16x128xi1>, vector<16x128xf32>
    %12 = arith.truncf %11 : vector<16x128xf32> to vector<16x128xbf16>
    %c0_8 = arith.constant 0 : index
    %c0_9 = arith.constant 0 : index
    %13 = vector.load %arg5[%c0_8, %c0_9] : memref<128x128xbf16, #tpu.memory_space<vmem>>, vector<128x128xbf16>
    %cst_10 = arith.constant dense<0.000000e+00> : vector<16x128xf32>
    %14 = tpu.matmul %12, %13, %cst_10 {dimension_numbers = #tpu.dot_dimension_numbers<[1], [0], [0], [1], [0, 0, 1, 1], [], []>} : vector<16x128xbf16>, vector<128x128xbf16>, vector<16x128xf32> -> vector<16x128xf32>
    %c0_11 = arith.constant 0 : index
    %c0_12 = arith.constant 0 : index
    %15 = vector.load %arg6[%c0_11, %c0_12] : memref<1x128xf32, #tpu.memory_space<vmem>>, vector<1x128xf32>
    %16 = vector.broadcast %15 : vector<1x128xf32> to vector<16x128xf32>
    %17 = arith.addf %14, %16 : vector<16x128xf32>
    %cst_13 = arith.constant 0.000000e+00 : f32
    %18 = vector.broadcast %cst_13 : f32 to vector<16x128xf32>
    %19 = arith.cmpf ogt, %17, %18 : vector<16x128xf32>
    %cst_14 = arith.constant 0.00999999977 : f32
    %20 = vector.broadcast %cst_14 : f32 to vector<16x128xf32>
    %21 = arith.mulf %20, %17 : vector<16x128xf32>
    %22 = arith.select %19, %17, %21 : vector<16x128xi1>, vector<16x128xf32>
    %23 = arith.truncf %22 : vector<16x128xf32> to vector<16x128xbf16>
    %c0_15 = arith.constant 0 : index
    %c0_16 = arith.constant 0 : index
    %24 = vector.load %arg7[%c0_15, %c0_16] : memref<128x128xbf16, #tpu.memory_space<vmem>>, vector<128x128xbf16>
    %cst_17 = arith.constant dense<0.000000e+00> : vector<16x128xf32>
    %25 = tpu.matmul %23, %24, %cst_17 {dimension_numbers = #tpu.dot_dimension_numbers<[1], [0], [0], [1], [0, 0, 1, 1], [], []>} : vector<16x128xbf16>, vector<128x128xbf16>, vector<16x128xf32> -> vector<16x128xf32>
    %c0_18 = arith.constant 0 : index
    %c0_19 = arith.constant 0 : index
    %26 = vector.load %arg8[%c0_18, %c0_19] : memref<1x128xf32, #tpu.memory_space<vmem>>, vector<1x128xf32>
    %27 = vector.broadcast %26 : vector<1x128xf32> to vector<16x128xf32>
    %28 = arith.addf %25, %27 : vector<16x128xf32>
    %29 = math.tanh %28 : vector<16x128xf32>
    %30 = vector.broadcast %0 : f32 to vector<16x128xf32>
    %31 = arith.mulf %29, %30 : vector<16x128xf32>
    %c0_20 = arith.constant 0 : index
    %c0_21 = arith.constant 0 : index
    %32 = vector.load %arg9[%c0_20, %c0_21] : memref<16x128xf32, #tpu.memory_space<vmem>>, vector<16x128xf32>
    tpu.vector_store %arg9[%c0_20, %c0_21], %31 {strides = array<i32>} : memref<16x128xf32, #tpu.memory_space<vmem>>, vector<16x128xf32>,
    return
  }
  func.func @transform_0(%arg0: i32) -> i32 {
    %c0_i32 = arith.constant 0 : i32
    %c0_i32_0 = arith.constant 0 : i32
    return %c0_i32 : i32
  }
  func.func @transform_1(%arg0: i32) -> (i32, i32) {
    %c0_i32 = arith.constant 0 : i32
    %c0_i32_0 = arith.constant 0 : i32
    return %arg0, %c0_i32 : i32, i32
  }
  func.func @transform_2(%arg0: i32) -> (i32, i32) {
    %c0_i32 = arith.constant 0 : i32
    %c0_i32_0 = arith.constant 0 : i32
    %c0_i32_1 = arith.constant 0 : i32
    return %c0_i32, %c0_i32_0 : i32, i32
  }
  func.func @transform_3(%arg0: i32) -> (i32, i32) {
    %c0_i32 = arith.constant 0 : i32
    %c0_i32_0 = arith.constant 0 : i32
    %c0_i32_1 = arith.constant 0 : i32
    return %c0_i32, %c0_i32_0 : i32, i32
  }
  func.func @transform_4(%arg0: i32) -> (i32, i32) {
    %c0_i32 = arith.constant 0 : i32
    %c0_i32_0 = arith.constant 0 : i32
    %c0_i32_1 = arith.constant 0 : i32
    return %c0_i32, %c0_i32_0 : i32, i32
  }
  func.func @transform_5(%arg0: i32) -> (i32, i32) {
    %c0_i32 = arith.constant 0 : i32
    %c0_i32_0 = arith.constant 0 : i32
    %c0_i32_1 = arith.constant 0 : i32
    return %c0_i32, %c0_i32_0 : i32, i32
  }
  func.func @transform_6(%arg0: i32) -> (i32, i32) {
    %c0_i32 = arith.constant 0 : i32
    %c0_i32_0 = arith.constant 0 : i32
    %c0_i32_1 = arith.constant 0 : i32
    return %c0_i32, %c0_i32_0 : i32, i32
  }
  func.func @transform_7(%arg0: i32) -> (i32, i32) {
    %c0_i32 = arith.constant 0 : i32
    %c0_i32_0 = arith.constant 0 : i32
    %c0_i32_1 = arith.constant 0 : i32
    return %c0_i32, %c0_i32_0 : i32, i32
  }
  func.func @transform_8(%arg0: i32) -> (i32, i32) {
    %c0_i32 = arith.constant 0 : i32
    %c0_i32_0 = arith.constant 0 : i32
    return %arg0, %c0_i32 : i32, i32
  }
}

</mosaic_0001>

<llo_original>
// kernel: tpu_custom_call.1
$region0: #{tpu_custom_call.1}
  #allocation0 [shape = 'u32[]', space=smem, size = 0x4, offset = 0x4, fixed_abs, tag = 'smem constant byte address 0x4 - core index']
  #allocation1 [shape = 'u32[72,128]{1,0:T(1,128)}', space=vmem, size = 0x9000, scoped, tag = 'internal scratch']
  #allocation2 [shape = 'f32[1]{0:T(128)S(6)}', space=smem, size = 0x200, scoped, tag = 'scoped memory for tpu_custom_call.1']
  %s0 = inlined_call_operand.<no memory space> [shape: f32[1], index: 0, kind: input, shape index: {}]
  %s1 = inlined_call_operand.hbm [shape: bf16[16,16], index: 1, kind: input, shape index: {}]
  %s2 = inlined_call_operand.hbm [shape: bf16[16,128], index: 2, kind: input, shape index: {}]
  %s3 = inlined_call_operand.vmem [shape: f32[1,128], index: 3, kind: input, shape index: {}]
  %s4 = inlined_call_operand.hbm [shape: bf16[128,128], index: 4, kind: input, shape index: {}]
  %s5 = inlined_call_operand.vmem [shape: f32[1,128], index: 5, kind: input, shape index: {}]
  %s6 = inlined_call_operand.hbm [shape: bf16[128,128], index: 6, kind: input, shape index: {}]
  %s7 = inlined_call_operand.vmem [shape: f32[1,128], index: 7, kind: input, shape index: {}]
  %s8 = inlined_call_operand.hbm [shape: f32[16,128], index: 8, kind: output, shape index: {}]
  %s9 = sld [smem:[#allocation0]]
  $region58: #{tpu_custom_call.1} parent=0
    _
  %s11 = ssub.s32 1, %s9
  %s12 = scalar_select 0, %s11, %s9
  %13 = sst [smem:[#allocation2]] %s0
  $region1: #{tpu_custom_call.1} parent=0
    #allocation3 [shape = 'u8[4096]{0}', space=vmem, size = 0x1000, scoped, tag = 'input window, operand 1, single buffered']
    #allocation4 [shape = 's32[1]{0}', space=sflag, size = 0x4, scoped, tag = 'scoped memory for tpu_custom_call.1']
    #allocation5 [shape = 's32[1]{0}', space=sflag, size = 0x4, scoped, tag = 'scoped memory for tpu_custom_call.1']
    #allocation6 [shape = 'u8[4096]{0}', space=vmem, size = 0x1000, scoped, tag = 'input window, operand 2, single buffered']
    #allocation7 [shape = 's32[1]{0}', space=sflag, size = 0x4, scoped, tag = 'scoped memory for tpu_custom_call.1']
    #allocation8 [shape = 'u8[32768]{0}', space=vmem, size = 0x8000, scoped, tag = 'input window, operand 4, single buffered']
    #allocation9 [shape = 'u8[32768]{0}', space=vmem, size = 0x8000, scoped, tag = 'input window, operand 6, single buffered']
    #allocation10 [shape = 's32[1]{0}', space=sflag, size = 0x4, scoped, tag = 'scoped memory for tpu_custom_call.1']
    #allocation11 [shape = 'u8[8192]{0}', space=vmem, size = 0x2000, scoped, tag = 'output window, operand 0, single buffered']
    %14 = vsyncpa [#allocation4], 0
    %15 = vsyncpa [#allocation7], 0
    %16 = vsyncpa [#allocation10], 0
    %17 = vsyncpa [#allocation5], 0
    // Predicated region
    $region2: #{tpu_custom_call.1} parent=1 // pred_check
      _
    $region3: #{tpu_custom_call.1} parent=1 // pred_check_branch
      %19 = sbr.rel (0) target = $region5
    $region4: #{tpu_custom_call.1} parent=1 // pred_region
      _
    $region5: #{tpu_custom_call.1} parent=1 // pred_fallthru
      _
    // Predicated region
    $region6: #{tpu_custom_call.1} parent=1 // pred_check
      _
    $region7: #{tpu_custom_call.1} parent=1 // pred_check_branch
      %21 = sbr.rel (0) target = $region9
    $region8: #{tpu_custom_call.1} parent=1 // pred_region
      %23 = vsyncadd [#allocation4], 0
      %s24 = sshll.u32 %s1, 4
      %s25 = int_to_ptr.hbm [resolvable:$true] %s24
      %s26 = sshll.u32 [#allocation3], 4
      %s27 = int_to_ptr.vmem [resolvable:$true] %s26
      %32 = dma.hbm_to_vmem [thread:$0]  %s25, 128, %s27, [#allocation4], 64, 64, 4
    $region9: #{tpu_custom_call.1} parent=1 // pred_fallthru
      _
    // Predicated region
    $region10: #{tpu_custom_call.1} parent=1 // pred_check
      _
    $region11: #{tpu_custom_call.1} parent=1 // pred_check_branch
      %34 = sbr.rel (0) target = $region13
    $region12: #{tpu_custom_call.1} parent=1 // pred_region
      %36 = vsyncadd [#allocation7], 0
      %s37 = sshll.u32 %s2, 4
      %s38 = int_to_ptr.hbm [resolvable:$true] %s37
      %s39 = sshll.u32 [#allocation6], 4
      %s40 = int_to_ptr.vmem [resolvable:$true] %s39
      %45 = dma.hbm_to_vmem [thread:$0]  %s38, 128, %s40, [#allocation7], 64, 64, 4
    $region13: #{tpu_custom_call.1} parent=1 // pred_fallthru
      _
    // Predicated region
    $region14: #{tpu_custom_call.1} parent=1 // pred_check
      _
    $region15: #{tpu_custom_call.1} parent=1 // pred_check_branch
      %47 = sbr.rel (0) target = $region17
    $region16: #{tpu_custom_call.1} parent=1 // pred_region
      _
    $region17: #{tpu_custom_call.1} parent=1 // pred_fallthru
      _
    // Predicated region
    $region18: #{tpu_custom_call.1} parent=1 // pred_check
      _
    $region19: #{tpu_custom_call.1} parent=1 // pred_check_branch
      %49 = sbr.rel (0) target = $region21
    $region20: #{tpu_custom_call.1} parent=1 // pred_region
      %51 = vsyncadd [#allocation7], 0
      %s52 = sshll.u32 %s4, 4
      %s53 = int_to_ptr.hbm [resolvable:$true] %s52
      %s54 = sshll.u32 [#allocation8], 4
      %s55 = int_to_ptr.vmem [resolvable:$true] %s54
      %60 = dma.hbm_to_vmem [thread:$0]  %s53, 1024, %s55, [#allocation7], 64, 64, 4
    $region21: #{tpu_custom_call.1} parent=1 // pred_fallthru
      _
    // Predicated region
    $region22: #{tpu_custom_call.1} parent=1 // pred_check
      _
    $region23: #{tpu_custom_call.1} parent=1 // pred_check_branch
      %62 = sbr.rel (0) target = $region25
    $region24: #{tpu_custom_call.1} parent=1 // pred_region
      _
    $region25: #{tpu_custom_call.1} parent=1 // pred_fallthru
      _
    // Predicated region
    $region26: #{tpu_custom_call.1} parent=1 // pred_check
      _
    $region27: #{tpu_custom_call.1} parent=1 // pred_check_branch
      %64 = sbr.rel (0) target = $region29
    $region28: #{tpu_custom_call.1} parent=1 // pred_region
      %66 = vsyncadd [#allocation10], 0
      %s67 = sshll.u32 %s6, 4
      %s68 = int_to_ptr.hbm [resolvable:$true] %s67
      %s69 = sshll.u32 [#allocation9], 4
      %s70 = int_to_ptr.vmem [resolvable:$true] %s69
      %75 = dma.hbm_to_vmem [thread:$0]  %s68, 1024, %s70, [#allocation10], 64, 64, 4
    $region29: #{tpu_custom_call.1} parent=1 // pred_fallthru
      _
    // Predicated region
    $region30: #{tpu_custom_call.1} parent=1 // pred_check
      _
    $region31: #{tpu_custom_call.1} parent=1 // pred_check_branch
      %77 = sbr.rel (0) target = $region33
    $region32: #{tpu_custom_call.1} parent=1 // pred_region
      _
    $region33: #{tpu_custom_call.1} parent=1 // pred_fallthru
      _
    // Predicated region
    $region34: #{tpu_custom_call.1} parent=1 // pred_check
      _
    $region35: #{tpu_custom_call.1} parent=1 // pred_check_branch
      %79 = sbr.rel (0) target = $region37
    $region36: #{tpu_custom_call.1} parent=1 // pred_region
      %81 = dma.done [#allocation4], 128
    $region37: #{tpu_custom_call.1} parent=1 // pred_fallthru
      _
    // Predicated region
    $region38: #{tpu_custom_call.1} parent=1 // pred_check
      _
    $region39: #{tpu_custom_call.1} parent=1 // pred_check_branch
      %83 = sbr.rel (0) target = $region41
    $region40: #{tpu_custom_call.1} parent=1 // pred_region
      %85 = dma.done [#allocation7], 128
    $region41: #{tpu_custom_call.1} parent=1 // pred_fallthru
      _
    // Predicated region
    $region42: #{tpu_custom_call.1} parent=1 // pred_check
      _
    $region43: #{tpu_custom_call.1} parent=1 // pred_check_branch
      %87 = sbr.rel (0) target = $region45
    $region44: #{tpu_custom_call.1} parent=1 // pred_region
      %89 = dma.done [#allocation7], 1024
    $region45: #{tpu_custom_call.1} parent=1 // pred_fallthru
      _
    // Predicated region
    $region46: #{tpu_custom_call.1} parent=1 // pred_check
      _
    $region47: #{tpu_custom_call.1} parent=1 // pred_check_branch
      %91 = sbr.rel (0) target = $region49
    $region48: #{tpu_custom_call.1} parent=1 // pred_region
      %93 = dma.done [#allocation10], 1024
    $region49: #{tpu_custom_call.1} parent=1 // pred_fallthru
      _
    %s95 = sld [smem:[#allocation2]]
    %v96 = vld [vmem:[#allocation3] sm:$0xf]
    %v97 = vld [vmem:[#allocation3 + $0x4] sm:$0xf]
    %v98 = vld [vmem:[#allocation6] sm:$0xf]
    %v99 = vld [vmem:[#allocation6 + $0x4] sm:$0xf]
    %v100 = vld [vmem:[%s3] sm:$0x1]
    %v102 = vperm.slane %v100, 0
    %v106 = vunpack.c.l.b16 %v96
    %v107 = vunpack.c.l.b16 %v97
    %v108 = vpack.c.b16 %v107, %v106
    %v111 = vunpack.c.l.b16 %v98
    %v112 = vunpack.c.l.b16 %v99
    %v113 = vpack.c.b16 %v112, %v111
    %vm115 = vcmask 130048
    %v117 = vsel %vm115, %v108, 0
    %119 = vmatpush.bf16.msra.mxu0 0
    %120 = vmatpush.bf16.msra.mxu0 0
    %121 = vmatpush.bf16.msra.mxu0 0
    %122 = vmatpush.bf16.msra.mxu0 0
    %123 = vmatpush.bf16.msra.mxu0 0
    %124 = vmatpush.bf16.msra.mxu0 0
    %125 = vmatpush.bf16.msra.mxu0 0
    %126 = vmatpush.bf16.msra.mxu0 %v113
    %127 = vmatmul.bf16.gmra.mxu0 %v117
    %v128 = vpop.f32.mrf.mxu0
    %v129 = vadd.f32 %v102, %v128
    %v130 = vpop.f32.mrf.mxu0
    %v131 = vadd.f32 %v102, %v130
    %132 = vdwg.mxu0
    %vm133 = vcmp.gt.f32.partialorder %v129, 0.0
    %vm134 = vcmp.gt.f32.partialorder %v131, 0.0
    %v135 = vmul.f32 %v129, 0.01
    %v136 = vmul.f32 %v131, 0.01
    %v137 = vsel %vm133, %v129, %v135
    %v138 = vsel %vm134, %v131, %v136
    %v139 = vpack.c.bf16 %v138, %v137
    %v140 = vld [vmem:[#allocation8] sm:$0xf]
    %v141 = vld [vmem:[#allocation8 + $0x4] sm:$0xf]
    %v142 = vld [vmem:[#allocation8 + $0x8] sm:$0xf]
    %v143 = vld [vmem:[#allocation8 + $0xc] sm:$0xf]
    %v144 = vld [vmem:[#allocation8 + $0x10] sm:$0xf]
    %v145 = vld [vmem:[#allocation8 + $0x14] sm:$0xf]
    %v146 = vld [vmem:[#allocation8 + $0x18] sm:$0xf]
    %v147 = vld [vmem:[#allocation8 + $0x1c] sm:$0xf]
    %v148 = vld [vmem:[#allocation8 + $0x20] sm:$0xf]
    %v149 = vld [vmem:[#allocation8 + $0x24] sm:$0xf]
    %v150 = vld [vmem:[#allocation8 + $0x28] sm:$0xf]
    %v151 = vld [vmem:[#allocation8 + $0x2c] sm:$0xf]
    %v152 = vld [vmem:[#allocation8 + $0x30] sm:$0xf]
    %v153 = vld [vmem:[#allocation8 + $0x34] sm:$0xf]
    %v154 = vld [vmem:[#allocation8 + $0x38] sm:$0xf]
    %v155 = vld [vmem:[#allocation8 + $0x3c] sm:$0xf]
    %v156 = vld [vmem:[%s5] sm:$0x1]
    %v158 = vperm.slane %v156, 0
    %v176 = vunpack.c.l.b16 %v140
    %v177 = vunpack.c.l.b16 %v141
    %v178 = vunpack.c.l.b16 %v142
    %v179 = vunpack.c.l.b16 %v143
    %v180 = vunpack.c.l.b16 %v144
    %v181 = vunpack.c.l.b16 %v145
    %v182 = vunpack.c.l.b16 %v146
    %v183 = vunpack.c.l.b16 %v147
    %v184 = vunpack.c.l.b16 %v148
    %v185 = vunpack.c.l.b16 %v149
    %v186 = vunpack.c.l.b16 %v150
    %v187 = vunpack.c.l.b16 %v151
    %v188 = vunpack.c.l.b16 %v152
    %v189 = vunpack.c.l.b16 %v153
    %v190 = vunpack.c.l.b16 %v154
    %v191 = vunpack.c.l.b16 %v155
    %v192 = vpack.c.b16 %v177, %v176
    %v193 = vpack.c.b16 %v179, %v178
    %v194 = vpack.c.b16 %v181, %v180
    %v195 = vpack.c.b16 %v183, %v182
    %v196 = vpack.c.b16 %v185, %v184
    %v197 = vpack.c.b16 %v187, %v186
    %v198 = vpack.c.b16 %v189, %v188
    %v199 = vpack.c.b16 %v191, %v190
    %208 = vmatpush.bf16.msra.mxu0 %v199
    %209 = vmatpush.bf16.msra.mxu0 %v198
    %210 = vmatpush.bf16.msra.mxu0 %v197
    %211 = vmatpush.bf16.msra.mxu0 %v196
    %212 = vmatpush.bf16.msra.mxu0 %v195
    %213 = vmatpush.bf16.msra.mxu0 %v194
    %214 = vmatpush.bf16.msra.mxu0 %v193
    %215 = vmatpush.bf16.msra.mxu0 %v192
    %216 = vmatmul.bf16.gmra.mxu0 %v139
    %v217 = vpop.f32.mrf.mxu0
    %v218 = vadd.f32 %v158, %v217
    %v219 = vpop.f32.mrf.mxu0
    %v220 = vadd.f32 %v158, %v219
    %221 = vdwg.mxu0
    %vm222 = vcmp.gt.f32.partialorder %v218, 0.0
    %vm223 = vcmp.gt.f32.partialorder %v220, 0.0
    %v224 = vmul.f32 %v218, 0.01
    %v225 = vmul.f32 %v220, 0.01
    %v226 = vsel %vm222, %v218, %v224
    %v227 = vsel %vm223, %v220, %v225
    %v228 = vpack.c.bf16 %v227, %v226
    %v229 = vld [vmem:[#allocation9] sm:$0xf]
    %v230 = vld [vmem:[#allocation9 + $0x4] sm:$0xf]
    %v231 = vld [vmem:[#allocation9 + $0x8] sm:$0xf]
    %v232 = vld [vmem:[#allocation9 + $0xc] sm:$0xf]
    %v233 = vld [vmem:[#allocation9 + $0x10] sm:$0xf]
    %v234 = vld [vmem:[#allocation9 + $0x14] sm:$0xf]
    %v235 = vld [vmem:[#allocation9 + $0x18] sm:$0xf]
    %v236 = vld [vmem:[#allocation9 + $0x1c] sm:$0xf]
    %v237 = vld [vmem:[#allocation9 + $0x20] sm:$0xf]
    %v238 = vld [vmem:[#allocation9 + $0x24] sm:$0xf]
    %v239 = vld [vmem:[#allocation9 + $0x28] sm:$0xf]
    %v240 = vld [vmem:[#allocation9 + $0x2c] sm:$0xf]
    %v241 = vld [vmem:[#allocation9 + $0x30] sm:$0xf]
    %v242 = vld [vmem:[#allocation9 + $0x34] sm:$0xf]
    %v243 = vld [vmem:[#allocation9 + $0x38] sm:$0xf]
    %v244 = vld [vmem:[#allocation9 + $0x3c] sm:$0xf]
    %v245 = vld [vmem:[%s7] sm:$0x1]
    %v247 = vperm.slane %v245, 0
    %v265 = vunpack.c.l.b16 %v229
    %v266 = vunpack.c.l.b16 %v230
    %v267 = vunpack.c.l.b16 %v231
    %v268 = vunpack.c.l.b16 %v232
    %v269 = vunpack.c.l.b16 %v233
    %v270 = vunpack.c.l.b16 %v234
    %v271 = vunpack.c.l.b16 %v235
    %v272 = vunpack.c.l.b16 %v236
    %v273 = vunpack.c.l.b16 %v237
    %v274 = vunpack.c.l.b16 %v238
    %v275 = vunpack.c.l.b16 %v239
    %v276 = vunpack.c.l.b16 %v240
    %v277 = vunpack.c.l.b16 %v241
    %v278 = vunpack.c.l.b16 %v242
    %v279 = vunpack.c.l.b16 %v243
    %v280 = vunpack.c.l.b16 %v244
    %v281 = vpack.c.b16 %v266, %v265
    %v282 = vpack.c.b16 %v268, %v267
    %v283 = vpack.c.b16 %v270, %v269
    %v284 = vpack.c.b16 %v272, %v271
    %v285 = vpack.c.b16 %v274, %v273
    %v286 = vpack.c.b16 %v276, %v275
    %v287 = vpack.c.b16 %v278, %v277
    %v288 = vpack.c.b16 %v280, %v279
    %297 = vmatpush.bf16.msra.mxu0 %v288
    %298 = vmatpush.bf16.msra.mxu0 %v287
    %299 = vmatpush.bf16.msra.mxu0 %v286
    %300 = vmatpush.bf16.msra.mxu0 %v285
    %301 = vmatpush.bf16.msra.mxu0 %v284
    %302 = vmatpush.bf16.msra.mxu0 %v283
    %303 = vmatpush.bf16.msra.mxu0 %v282
    %304 = vmatpush.bf16.msra.mxu0 %v281
    %305 = vmatmul.bf16.gmra.mxu0 %v228
    %v306 = vpop.f32.mrf.mxu0
    %v307 = vadd.f32 %v247, %v306
    %v308 = vpop.f32.mrf.mxu0
    %v309 = vadd.f32 %v247, %v308
    %310 = vdwg.mxu0
    %v311 = vtanh.pop %v307
    %v312 = vtanh.pop %v309
    %v313 = vstv %s95
    %v314 = vmul.f32 %v311, %v313
    %v315 = vmul.f32 %v312, %v313
    %316 = vst [vmem:[#allocation11] sm:$0xff] %v314
    %317 = vst [vmem:[#allocation11 + $0x8] sm:$0xff] %v315
    // Predicated region
    $region50: #{tpu_custom_call.1} parent=1 // pred_check
      _
    $region51: #{tpu_custom_call.1} parent=1 // pred_check_branch
      %319 = sbr.rel (0) target = $region53
    $region52: #{tpu_custom_call.1} parent=1 // pred_region
      %321 = vsyncadd [#allocation5], 0
      %s322 = sshll.u32 [#allocation11], 4
      %s323 = int_to_ptr.vmem [resolvable:$true] %s322
      %s324 = sshll.u32 %s8, 4
      %s325 = int_to_ptr.hbm [resolvable:$true] %s324
      %330 = dma.vmem_to_hbm [thread:$0]  %s323, 256, %s325, [#allocation5], 128, 128, 8
    $region53: #{tpu_custom_call.1} parent=1 // pred_fallthru
      _
    // Predicated region
    $region54: #{tpu_custom_call.1} parent=1 // pred_check
      _
    $region55: #{tpu_custom_call.1} parent=1 // pred_check_branch
      %332 = sbr.rel (0) target = $region57
    $region56: #{tpu_custom_call.1} parent=1 // pred_region
      %334 = dma.done [#allocation5], 256
    $region57: #{tpu_custom_call.1} parent=1 // pred_fallthru
      _
    %335 = vsyncpa [#allocation4], 1
    %336 = vsyncpa [#allocation7], 1
    %337 = vsyncpa [#allocation10], 1
    %338 = vsyncpa [#allocation5], 1

</llo_original>
